<compile_context>
chip_gen: v7x
topology: tpu7x:2x2x1
jax: 0.10.0
libtpu: 0.0.40
codegen_flags: <defaults>
</compile_context>

<pallas_src>
import math
import functools

import jax
import jax.numpy as jnp
import numpy as np
from jax.experimental import pallas as pl
from jax.experimental.pallas import tpu as pltpu


def _round_up(a, m):
    return (a + m - 1) // m * m


def deyo_kernel(xs_ref, w_ref, bias_ref, delta_ref, logits_ref, stats_ref,
                acc_ref, *, n_classes, k_pad):
    """Fused DeYO forward step.

    grid = (m_tiles, k_tiles): axis 0 tiles the batch (parallel, megacore),
    axis 1 tiles the flattened-pixel contraction (reduction, arbitrary).
    The finalize block adds bias, applies the precomputed occlusion delta,
    and produces entropy / plpd in one lane-dense stats slab.
    """
    k = pl.program_id(1)

    @pl.when(k == 0)
    def _():
        acc_ref[...] = jnp.zeros_like(acc_ref)

    # [M_TILE, cp_tile] x [cp_tile, k_pad] bf16 -> f32 accumulation.
    acc_ref[...] += jnp.dot(xs_ref[...], w_ref[...],
                            preferred_element_type=jnp.float32)

    @pl.when(k == pl.num_programs(1) - 1)
    def _():
        bias = bias_ref[...].astype(jnp.float32)           # [1, k_pad]
        logits = acc_ref[...] + bias                       # [M_TILE, k_pad]
        # outputs_prime = model(x_occ) = model(x) + delta (delta precomputed).
        logits_prime = logits + delta_ref[...]
        m = logits.shape[0]

        col = jax.lax.broadcasted_iota(jnp.int32, (m, k_pad), 1)
        valid = col < n_classes

        # Masked softmax of the real logits; entropy in the stable
        #   H = log(s) - sum(e * (z - zmax)) / s
        # form (no log-softmax tensor materialized).
        zm = jnp.where(valid, logits, -1e30)
        zmax = jnp.max(zm, axis=1, keepdims=True)
        zc = zm - zmax
        e = jnp.exp(zc)                                    # 0 exactly on pads
        s = jnp.sum(e, axis=1, keepdims=True)
        inv_s = 1.0 / s                                    # exact division
        ent = jnp.log(s) - jnp.sum(e * zc, axis=1, keepdims=True) * inv_s

        # cls1 = first-index argmax of the logits; p[cls1] == 1/s exactly.
        cls1 = jnp.min(jnp.where(zm == zmax, col, k_pad), axis=1,
                       keepdims=True)
        maxp = inv_s

        # softmax(logits_prime) gathered at cls1 (only the gathered value is
        # needed; no entropy / log-probs for the primed logits).
        zpm = jnp.where(valid, logits_prime, -1e30)
        zpmax = jnp.max(zpm, axis=1, keepdims=True)
        ep = jnp.exp(zpm - zpmax)
        sp = jnp.sum(ep, axis=1, keepdims=True)
        p_prime_at = jnp.sum(jnp.where(col == cls1, ep, 0.0), axis=1,
                             keepdims=True) / sp
        plpd = maxp - p_prime_at

        logits_ref[...] = logits
        # Lane-dense stats slab: column 0 = entropy, column 1 = plpd.
        scol = jax.lax.broadcasted_iota(jnp.int32, stats_ref.shape, 1)
        stats_ref[...] = jnp.where(scol == 0, ent,
                                   jnp.where(scol == 1, plpd, 0.0))


def deyo_forward(x_nchw, w, b, *,
                 row_start=4, col_start=4, occ_size=8,
                 deyo_margin=0.5 * math.log(1000),
                 margin_e0=0.4 * math.log(1000)):
    """Returns (outputs, entropys_return, plpd_return) like DeYO.forward."""
    # deyo_margin / margin_e0 only gate the (omitted) optimizer adaptation
    # step; the returned tensors are computed on the full batch as in PyTorch.
    B, C, H, W = x_nchw.shape
    P = H * W
    CP = C * P
    K = w.shape[-1]

    K_pad = _round_up(K, 128)
    # bf16 sublane packing: pad batch to a multiple of 16.
    M_pad = _round_up(max(B, 16), 16)
    if M_pad > 128:
        M_pad = _round_up(M_pad, 128)
        M_TILE = 128
    else:
        M_TILE = M_pad
    n_m = M_pad // M_TILE

    CP_TILE = min(2048, _round_up(CP, 128))
    CP_pad = _round_up(CP, CP_TILE)
    n_k = CP_pad // CP_TILE

    # ---- static host-side preprocessing ------------------------------------
    w_flat = w.reshape(CP, K).astype(jnp.float32)                    # [CP, K]
    rows = row_start + jnp.arange(occ_size)
    cols = col_start + jnp.arange(occ_size)
    pix_idx = (rows[:, None] * W + cols[None, :]).reshape(-1)        # [S*S]
    win_idx = (jnp.arange(C)[:, None] * P + pix_idx[None, :]).reshape(-1)

    w_win = w_flat[win_idx]                                          # [C*S*S, K]
    # Window column-sums per channel: the per-channel-mean fill contributes
    # chan_mean @ wsum_win to the occluded logits.
    wsum_win = w_win.reshape(C, occ_size * occ_size, K).sum(axis=1)  # [C, K]

    x_flat = x_nchw.reshape(B, CP).astype(jnp.float32)
    chan_mean = x_flat.reshape(B, C, P).mean(axis=2)                 # [B, C]
    x_win = x_flat[:, win_idx]                                       # [B, C*S*S]

    # delta = model(x_occ) - model(x): rank-C mean term minus window term.
    # Two tiny f32 matmuls in the wrapper; consumed only at kernel finalize.
    delta = chan_mean @ wsum_win - x_win @ w_win                     # [B, K]

    def pad2(a, r, c):
        return jnp.pad(a, ((0, r - a.shape[0]), (0, c - a.shape[1])))

    w_p = pad2(w_flat, CP_pad, K_pad).astype(jnp.bfloat16)           # [CP_pad, K_pad]
    bias_p = pad2(b.reshape(1, K).astype(jnp.float32), 1, K_pad)
    xs = pad2(x_flat, M_pad, CP_pad).astype(jnp.bfloat16)
    delta_p = pad2(delta, M_pad, K_pad).astype(jnp.float32)

    # ---- generation-aware VMEM budget --------------------------------------
    try:
        vmem_cap = int(pltpu.get_tpu_info().vmem_capacity_bytes)
    except Exception:
        vmem_cap = 64 * 1024 * 1024  # conservative (v7x per-TC)
    streamed = 2 * (M_TILE * CP_TILE * 2 + CP_TILE * K_pad * 2)      # dbl-buf bf16
    resident = (3 * M_TILE * K_pad * 4      # acc + logits out + delta
                + M_TILE * 128 * 4          # stats out
                + K_pad * 4)                # bias
    vmem_limit = min(int(vmem_cap * 3 // 4),
                     max(32 * 1024 * 1024, 2 * (streamed + resident)))

    kern = functools.partial(deyo_kernel, n_classes=K, k_pad=K_pad)
    logits_pad, stats = pl.pallas_call(
        kern,
        out_shape=(jax.ShapeDtypeStruct((M_pad, K_pad), jnp.float32),
                   jax.ShapeDtypeStruct((M_pad, 128), jnp.float32)),
        grid_spec=pltpu.PrefetchScalarGridSpec(
            num_scalar_prefetch=0,
            grid=(n_m, n_k),
            in_specs=[
                pl.BlockSpec((M_TILE, CP_TILE), lambda m, k: (m, k)),
                pl.BlockSpec((CP_TILE, K_pad), lambda m, k: (k, 0)),
                pl.BlockSpec((1, K_pad), lambda m, k: (0, 0)),
                pl.BlockSpec((M_TILE, K_pad), lambda m, k: (m, 0)),
            ],
            out_specs=(
                pl.BlockSpec((M_TILE, K_pad), lambda m, k: (m, 0)),
                pl.BlockSpec((M_TILE, 128), lambda m, k: (m, 0)),
            ),
            scratch_shapes=[pltpu.VMEM((M_TILE, K_pad), jnp.float32)]),
        compiler_params=pltpu.CompilerParams(
            dimension_semantics=("parallel", "arbitrary"),
            vmem_limit_bytes=vmem_limit),
    )(xs, w_p, bias_p, delta_p)

    outputs = logits_pad[:B, :K]
    entropys = stats[:B, 0]
    plpd = stats[:B, 1]
    return outputs, entropys, plpd


def _reference(x, w, b, *, row_start, col_start, occ_size):
    """Pure-JAX f32 reference mirroring the PyTorch forward (occ aug)."""
    B, C, H, W = x.shape
    K = w.shape[-1]
    w_flat = w.reshape(-1, K)
    logits = x.reshape(B, -1) @ w_flat + b.reshape(1, K)
    first_mean = x.reshape(B, C, -1).mean(axis=2)
    xp = x.at[:, :, row_start:row_start + occ_size,
              col_start:col_start + occ_size].set(first_mean[:, :, None, None])
    logits_p = xp.reshape(B, -1) @ w_flat + b.reshape(1, K)
    p = jax.nn.softmax(logits, axis=1)
    pp = jax.nn.softmax(logits_p, axis=1)
    ent = -(p * jax.nn.log_softmax(logits, axis=1)).sum(axis=1)
    cls1 = jnp.argmax(p, axis=1)
    plpd = p[jnp.arange(B), cls1] - pp[jnp.arange(B), cls1]
    return logits, ent, plpd


if __name__ == "__main__":
    key = jax.random.PRNGKey(0)
    B, C, H, W, K = 2, 4, 16, 16, 16          # small NCHW input, K classes
    kx, kw = jax.random.split(key)

    x = jax.random.normal(kx, (B, C, H, W), jnp.float32)
    # Deterministic synthetic "model" parameters (linear classifier on NCHW).
    wgt = 0.02 * jax.random.normal(kw, (C, H * W, K), jnp.float32)
    bias = jnp.zeros((1, K), jnp.float32)

    outputs, entropys, plpd = deyo_forward(x, wgt, bias,
                                           row_start=4, col_start=4,
                                           occ_size=8)
    jax.block_until_ready((outputs, entropys, plpd))

    assert outputs.shape == (B, K)
    assert entropys.shape == (B,)
    assert plpd.shape == (B,)
    assert bool(jnp.all(jnp.isfinite(outputs)))
    assert bool(jnp.all(jnp.isfinite(entropys)))
    assert bool(jnp.all(jnp.isfinite(plpd)))

    # Loose-tolerance check vs. f32 reference (inputs/weights go through bf16
    # on the MXU path, so expect ~1e-2-level deviations on the logits).
    ref_logits, ref_ent, ref_plpd = _reference(x, wgt, bias, row_start=4,
                                               col_start=4, occ_size=8)
    assert np.allclose(np.asarray(outputs), np.asarray(ref_logits),
                       rtol=1e-1, atol=1e-1)
    assert np.allclose(np.asarray(entropys), np.asarray(ref_ent),
                       rtol=1e-1, atol=1e-1)
    assert np.allclose(np.asarray(plpd), np.asarray(ref_plpd),
                       rtol=1e-1, atol=1e-1)

    print("KERNEL_OK")
</pallas_src>

<mosaic_0001>
module attributes {stable_mosaic.version = 11 : i64} {
  func.func @deyo_kernel(%arg0: i32, %arg1: i32, %arg2: memref<16x1024xbf16, #tpu.memory_space<vmem>>, %arg3: memref<1024x128xbf16, #tpu.memory_space<vmem>>, %arg4: memref<1x128xf32, #tpu.memory_space<vmem>>, %arg5: memref<16x128xf32, #tpu.memory_space<vmem>>, %arg6: memref<16x128xf32, #tpu.memory_space<vmem>>, %arg7: memref<16x128xf32, #tpu.memory_space<vmem>>, %arg8: memref<16x128xf32, #tpu.memory_space<vmem>>) attributes {dimension_semantics = [#tpu.dimension_semantics<parallel>, #tpu.dimension_semantics<arbitrary>], iteration_bounds = array<i64: 1, 1>, scalar_prefetch = 0 : i64, scratch_operands = 1 : i64, tpu.core_type = #tpu.core_type<tc>, window_params = [{transform_indices = @transform_0, window_bounds = array<i64: 16, 1024>}, {transform_indices = @transform_1, window_bounds = array<i64: 1024, 128>}, {pipeline_mode = #tpu.pipeline_mode<synchronous>, transform_indices = @transform_2, window_bounds = array<i64: 1, 128>}, {transform_indices = @transform_3, window_bounds = array<i64: 16, 128>}, {transform_indices = @transform_4, window_bounds = array<i64: 16, 128>}, {transform_indices = @transform_5, window_bounds = array<i64: 16, 128>}]} {
    %c0_i32 = arith.constant 0 : i32
    %0 = arith.cmpi eq, %arg1, %c0_i32 : i32
    %1 = arith.extui %0 : i1 to i32
    %c0_i32_0 = arith.constant 0 : i32
    %2 = arith.cmpi ne, %1, %c0_i32_0 : i32
    scf.if %2 {
      %cst_10 = arith.constant 0.000000e+00 : f32
      %12 = vector.broadcast %cst_10 : f32 to vector<16x128xf32>
      %c0_11 = arith.constant 0 : index
      %c0_12 = arith.constant 0 : index
      %13 = vector.load %arg8[%c0_11, %c0_12] : memref<16x128xf32, #tpu.memory_space<vmem>>, vector<16x128xf32>
      tpu.vector_store %arg8[%c0_11, %c0_12], %12 {strides = array<i32>} : memref<16x128xf32, #tpu.memory_space<vmem>>, vector<16x128xf32>,
    } else {
    }
    %c0 = arith.constant 0 : index
    %c0_1 = arith.constant 0 : index
    %3 = vector.load %arg8[%c0, %c0_1] : memref<16x128xf32, #tpu.memory_space<vmem>>, vector<16x128xf32>
    %c0_2 = arith.constant 0 : index
    %c0_3 = arith.constant 0 : index
    %4 = vector.load %arg2[%c0_2, %c0_3] : memref<16x1024xbf16, #tpu.memory_space<vmem>>, vector<16x1024xbf16>
    %c0_4 = arith.constant 0 : index
    %c0_5 = arith.constant 0 : index
    %5 = vector.load %arg3[%c0_4, %c0_5] : memref<1024x128xbf16, #tpu.memory_space<vmem>>, vector<1024x128xbf16>
    %cst = arith.constant dense<0.000000e+00> : vector<16x128xf32>
    %6 = tpu.matmul %4, %5, %cst {dimension_numbers = #tpu.dot_dimension_numbers<[1], [0], [0], [1], [0, 0, 1, 1], [], []>} : vector<16x1024xbf16>, vector<1024x128xbf16>, vector<16x128xf32> -> vector<16x128xf32>
    %7 = arith.addf %3, %6 : vector<16x128xf32>
    %c0_6 = arith.constant 0 : index
    %c0_7 = arith.constant 0 : index
    %8 = vector.load %arg8[%c0_6, %c0_7] : memref<16x128xf32, #tpu.memory_space<vmem>>, vector<16x128xf32>
    tpu.vector_store %arg8[%c0_6, %c0_7], %7 {strides = array<i32>} : memref<16x128xf32, #tpu.memory_space<vmem>>, vector<16x128xf32>,
    %c0_i32_8 = arith.constant 0 : i32
    %9 = arith.cmpi eq, %arg1, %c0_i32_8 : i32
    %10 = arith.extui %9 : i1 to i32
    %c0_i32_9 = arith.constant 0 : i32
    %11 = arith.cmpi ne, %10, %c0_i32_9 : i32
    scf.if %11 {
      %c0_10 = arith.constant 0 : index
      %c0_11 = arith.constant 0 : index
      %12 = vector.load %arg4[%c0_10, %c0_11] : memref<1x128xf32, #tpu.memory_space<vmem>>, vector<1x128xf32>
      %c0_12 = arith.constant 0 : index
      %c0_13 = arith.constant 0 : index
      %13 = vector.load %arg8[%c0_12, %c0_13] : memref<16x128xf32, #tpu.memory_space<vmem>>, vector<16x128xf32>
      %14 = vector.broadcast %12 : vector<1x128xf32> to vector<16x128xf32>
      %15 = arith.addf %13, %14 : vector<16x128xf32>
      %c0_14 = arith.constant 0 : index
      %c0_15 = arith.constant 0 : index
      %16 = vector.load %arg5[%c0_14, %c0_15] : memref<16x128xf32, #tpu.memory_space<vmem>>, vector<16x128xf32>
      %17 = arith.addf %15, %16 : vector<16x128xf32>
      %18 = tpu.iota {dimensions = array<i32: 1>} : vector<16x128xi32>
      %c16_i32 = arith.constant 16 : i32
      %19 = vector.broadcast %c16_i32 : i32 to vector<16x128xi32>
      %20 = arith.cmpi slt, %18, %19 : vector<16x128xi32>
      %cst_16 = arith.constant -1.000000e+30 : f32
      %21 = vector.broadcast %cst_16 : f32 to vector<16x128xf32>
      %22 = arith.select %20, %15, %21 : vector<16x128xi1>, vector<16x128xf32>
      %cst_17 = arith.constant dense<0xFF800000> : vector<16xf32>
      %23 = vector.multi_reduction <maximumf>, %22, %cst_17 [1] : vector<16x128xf32> to vector<16xf32>
      %24 = vector.shape_cast %23 : vector<16xf32> to vector<16x1xf32>
      %25 = vector.broadcast %24 : vector<16x1xf32> to vector<16x128xf32>
      %26 = arith.subf %22, %25 : vector<16x128xf32>
      %27 = math.exp %26 : vector<16x128xf32>
      %cst_18 = arith.constant dense<0.000000e+00> : vector<16xf32>
      %28 = vector.multi_reduction <add>, %27, %cst_18 [1] : vector<16x128xf32> to vector<16xf32>
      %29 = vector.shape_cast %28 : vector<16xf32> to vector<16x1xf32>
      %cst_19 = arith.constant 1.000000e+00 : f32
      %30 = vector.broadcast %cst_19 : f32 to vector<16x1xf32>
      %31 = arith.divf %30, %29 : vector<16x1xf32>
      %32 = math.log %29 : vector<16x1xf32>
      %33 = arith.mulf %27, %26 : vector<16x128xf32>
      %cst_20 = arith.constant dense<0.000000e+00> : vector<16xf32>
      %34 = vector.multi_reduction <add>, %33, %cst_20 [1] : vector<16x128xf32> to vector<16xf32>
      %35 = vector.shape_cast %34 : vector<16xf32> to vector<16x1xf32>
      %36 = arith.mulf %35, %31 : vector<16x1xf32>
      %37 = arith.subf %32, %36 : vector<16x1xf32>
      %38 = vector.broadcast %24 : vector<16x1xf32> to vector<16x128xf32>
      %39 = arith.cmpf oeq, %22, %38 : vector<16x128xf32>
      %c128_i32 = arith.constant 128 : i32
      %40 = vector.broadcast %c128_i32 : i32 to vector<16x128xi32>
      %41 = arith.select %39, %18, %40 : vector<16x128xi1>, vector<16x128xi32>
      %cst_21 = arith.constant dense<2147483647> : vector<16xi32>
      %42 = vector.multi_reduction <minsi>, %41, %cst_21 [1] : vector<16x128xi32> to vector<16xi32>
      %43 = vector.shape_cast %42 : vector<16xi32> to vector<16x1xi32>
      %cst_22 = arith.constant -1.000000e+30 : f32
      %44 = vector.broadcast %cst_22 : f32 to vector<16x128xf32>
      %45 = arith.select %20, %17, %44 : vector<16x128xi1>, vector<16x128xf32>
      %cst_23 = arith.constant dense<0xFF800000> : vector<16xf32>
      %46 = vector.multi_reduction <maximumf>, %45, %cst_23 [1] : vector<16x128xf32> to vector<16xf32>
      %47 = vector.shape_cast %46 : vector<16xf32> to vector<16x1xf32>
      %48 = vector.broadcast %47 : vector<16x1xf32> to vector<16x128xf32>
      %49 = arith.subf %45, %48 : vector<16x128xf32>
      %50 = math.exp %49 : vector<16x128xf32>
      %cst_24 = arith.constant dense<0.000000e+00> : vector<16xf32>
      %51 = vector.multi_reduction <add>, %50, %cst_24 [1] : vector<16x128xf32> to vector<16xf32>
      %52 = vector.shape_cast %51 : vector<16xf32> to vector<16x1xf32>
      %53 = vector.broadcast %43 : vector<16x1xi32> to vector<16x128xi32>
      %54 = arith.cmpi eq, %18, %53 : vector<16x128xi32>
      %cst_25 = arith.constant 0.000000e+00 : f32
      %55 = vector.broadcast %cst_25 : f32 to vector<16x128xf32>
      %56 = arith.select %54, %50, %55 : vector<16x128xi1>, vector<16x128xf32>
      %cst_26 = arith.constant dense<0.000000e+00> : vector<16xf32>
      %57 = vector.multi_reduction <add>, %56, %cst_26 [1] : vector<16x128xf32> to vector<16xf32>
      %58 = vector.shape_cast %57 : vector<16xf32> to vector<16x1xf32>
      %59 = arith.divf %58, %52 : vector<16x1xf32>
      %60 = arith.subf %31, %59 : vector<16x1xf32>
      %c0_27 = arith.constant 0 : index
      %c0_28 = arith.constant 0 : index
      %61 = vector.load %arg6[%c0_27, %c0_28] : memref<16x128xf32, #tpu.memory_space<vmem>>, vector<16x128xf32>
      tpu.vector_store %arg6[%c0_27, %c0_28], %15 {strides = array<i32>} : memref<16x128xf32, #tpu.memory_space<vmem>>, vector<16x128xf32>,
      %62 = tpu.iota {dimensions = array<i32: 1>} : vector<16x128xi32>
      %c0_i32_29 = arith.constant 0 : i32
      %63 = vector.broadcast %c0_i32_29 : i32 to vector<16x128xi32>
      %64 = arith.cmpi eq, %62, %63 : vector<16x128xi32>
      %c1_i32 = arith.constant 1 : i32
      %65 = vector.broadcast %c1_i32 : i32 to vector<16x128xi32>
      %66 = arith.cmpi eq, %62, %65 : vector<16x128xi32>
      %cst_30 = arith.constant 0.000000e+00 : f32
      %67 = vector.shape_cast %60 : vector<16x1xf32> to vector<16x1xf32>
      %68 = vector.broadcast %67 : vector<16x1xf32> to vector<16x128xf32>
      %69 = vector.broadcast %cst_30 : f32 to vector<16x128xf32>
      %70 = arith.select %66, %68, %69 : vector<16x128xi1>, vector<16x128xf32>
      %71 = vector.shape_cast %37 : vector<16x1xf32> to vector<16x1xf32>
      %72 = vector.broadcast %71 : vector<16x1xf32> to vector<16x128xf32>
      %73 = arith.select %64, %72, %70 : vector<16x128xi1>, vector<16x128xf32>
      %c0_31 = arith.constant 0 : index
      %c0_32 = arith.constant 0 : index
      %74 = vector.load %arg7[%c0_31, %c0_32] : memref<16x128xf32, #tpu.memory_space<vmem>>, vector<16x128xf32>
      tpu.vector_store %arg7[%c0_31, %c0_32], %73 {strides = array<i32>} : memref<16x128xf32, #tpu.memory_space<vmem>>, vector<16x128xf32>,
    } else {
    }
    return
  }
  func.func @transform_0(%arg0: i32, %arg1: i32) -> (i32, i32) {
    %c0_i32 = arith.constant 0 : i32
    return %arg0, %arg1 : i32, i32
  }
  func.func @transform_1(%arg0: i32, %arg1: i32) -> (i32, i32) {
    %c0_i32 = arith.constant 0 : i32
    %c0_i32_0 = arith.constant 0 : i32
    return %arg1, %c0_i32 : i32, i32
  }
  func.func @transform_2(%arg0: i32, %arg1: i32) -> (i32, i32) {
    %c0_i32 = arith.constant 0 : i32
    %c0_i32_0 = arith.constant 0 : i32
    %c0_i32_1 = arith.constant 0 : i32
    return %c0_i32, %c0_i32_0 : i32, i32
  }
  func.func @transform_3(%arg0: i32, %arg1: i32) -> (i32, i32) {
    %c0_i32 = arith.constant 0 : i32
    %c0_i32_0 = arith.constant 0 : i32
    return %arg0, %c0_i32 : i32, i32
  }
  func.func @transform_4(%arg0: i32, %arg1: i32) -> (i32, i32) {
    %c0_i32 = arith.constant 0 : i32
    %c0_i32_0 = arith.constant 0 : i32
    return %arg0, %c0_i32 : i32, i32
  }
  func.func @transform_5(%arg0: i32, %arg1: i32) -> (i32, i32) {
    %c0_i32 = arith.constant 0 : i32
    %c0_i32_0 = arith.constant 0 : i32
    return %arg0, %c0_i32 : i32, i32
  }
}

</mosaic_0001>

<llo_original>
// kernel: tpu_custom_call.1
$region0: #{tpu_custom_call.1}
  #allocation0 [shape = 'u32[]', space=smem, size = 0x4, offset = 0x4, fixed_abs, tag = 'smem constant byte address 0x4 - core index']
  #allocation1 [shape = 'u32[144,128]{1,0:T(1,128)}', space=vmem, size = 0x12000, scoped, tag = 'internal scratch']
  #allocation2 [shape = 'f32[16,128]{1,0:T(8,128)}', space=vmem, size = 0x2000, scoped, tag = 'scratch operand']
  %s0 = inlined_call_operand.hbm [shape: bf16[16,1024], index: 0, kind: input, shape index: {}]
  %s1 = inlined_call_operand.hbm [shape: bf16[1024,128], index: 1, kind: input, shape index: {}]
  %s2 = inlined_call_operand.vmem [shape: f32[1,128], index: 2, kind: input, shape index: {}]
  %s3 = inlined_call_operand.hbm [shape: f32[16,128], index: 3, kind: input, shape index: {}]
  %s4 = inlined_call_operand.hbm [shape: f32[16,128], index: 4, kind: output, shape index: {0}]
  %s5 = inlined_call_operand.hbm [shape: f32[16,128], index: 5, kind: output, shape index: {1}]
  %6 = xla_tuple %s4, %s5
  %s7 = sld [smem:[#allocation0]]
  $region54: #{tpu_custom_call.1} parent=0
    _
  %s9 = ssub.s32 1, %s7
  %s10 = scalar_select 0, %s9, %s7
  $region1: #{tpu_custom_call.1} parent=0
    #allocation3 [shape = 'u8[32768]{0}', space=vmem, size = 0x8000, scoped, tag = 'input window, operand 0, single buffered']
    #allocation4 [shape = 's32[1]{0}', space=sflag, size = 0x4, scoped, tag = 'scoped memory for tpu_custom_call.1']
    #allocation5 [shape = 's32[1]{0}', space=sflag, size = 0x4, scoped, tag = 'scoped memory for tpu_custom_call.1']
    #allocation6 [shape = 'u8[262144]{0}', space=vmem, size = 0x40000, scoped, tag = 'input window, operand 1, single buffered']
    #allocation7 [shape = 's32[1]{0}', space=sflag, size = 0x4, scoped, tag = 'scoped memory for tpu_custom_call.1']
    #allocation8 [shape = 'u8[8192]{0}', space=vmem, size = 0x2000, scoped, tag = 'input window, operand 3, single buffered']
    #allocation9 [shape = 'u8[8192]{0}', space=vmem, size = 0x2000, scoped, tag = 'output window, operand 0, single buffered']
    #allocation10 [shape = 'u8[8192]{0}', space=vmem, size = 0x2000, scoped, tag = 'output window, operand 1, single buffered']
    #allocation11 [shape = 's32[1]{0}', space=sflag, size = 0x4, scoped, tag = 'scoped memory for tpu_custom_call.1']
    %11 = vsyncpa [#allocation4], 0
    %12 = vsyncpa [#allocation7], 0
    %13 = vsyncpa [#allocation5], 0
    %14 = vsyncpa [#allocation11], 0
    // Predicated region
    $region2: #{tpu_custom_call.1} parent=1 // pred_check
      _
    $region3: #{tpu_custom_call.1} parent=1 // pred_check_branch
      %16 = sbr.rel (0) target = $region5
    $region4: #{tpu_custom_call.1} parent=1 // pred_region
      %s18 = ssub.s32 1024, 1024
      %19 = vsyncadd [#allocation4], %s18
      %s20 = sshll.u32 [#allocation3], 4
      %s21 = int_to_ptr.vmem [resolvable:$true] %s20
      %26 = dma.hbm_to_vmem [thread:$0]  %s0, 1024, %s21, [#allocation4], 512, 512, 32
    $region5: #{tpu_custom_call.1} parent=1 // pred_fallthru
      _
    // Predicated region
    $region6: #{tpu_custom_call.1} parent=1 // pred_check
      _
    $region7: #{tpu_custom_call.1} parent=1 // pred_check_branch
      %28 = sbr.rel (0) target = $region9
    $region8: #{tpu_custom_call.1} parent=1 // pred_region
      %s30 = ssub.s32 8192, 8192
      %31 = vsyncadd [#allocation7], %s30
      %s32 = sshll.u32 [#allocation6], 4
      %s33 = int_to_ptr.vmem [resolvable:$true] %s32
      %38 = dma.hbm_to_vmem [thread:$0]  %s1, 8192, %s33, [#allocation7], 64, 64, 4
    $region9: #{tpu_custom_call.1} parent=1 // pred_fallthru
      _
    // Predicated region
    $region10: #{tpu_custom_call.1} parent=1 // pred_check
      _
    $region11: #{tpu_custom_call.1} parent=1 // pred_check_branch
      %40 = sbr.rel (0) target = $region13
    $region12: #{tpu_custom_call.1} parent=1 // pred_region
      _
    $region13: #{tpu_custom_call.1} parent=1 // pred_fallthru
      _
    // Predicated region
    $region14: #{tpu_custom_call.1} parent=1 // pred_check
      _
    $region15: #{tpu_custom_call.1} parent=1 // pred_check_branch
      %42 = sbr.rel (0) target = $region17
    $region16: #{tpu_custom_call.1} parent=1 // pred_region
      %s44 = ssub.s32 256, 256
      %45 = vsyncadd [#allocation7], %s44
      %s46 = sshll.u32 [#allocation8], 4
      %s47 = int_to_ptr.vmem [resolvable:$true] %s46
      %52 = dma.hbm_to_vmem [thread:$0]  %s3, 256, %s47, [#allocation7], 128, 128, 8
    $region17: #{tpu_custom_call.1} parent=1 // pred_fallthru
      _
    // Predicated region
    $region18: #{tpu_custom_call.1} parent=1 // pred_check
      _
    $region19: #{tpu_custom_call.1} parent=1 // pred_check_branch
      %54 = sbr.rel (0) target = $region21
    $region20: #{tpu_custom_call.1} parent=1 // pred_region
      %55 = dma.done [#allocation4], 1024
    $region21: #{tpu_custom_call.1} parent=1 // pred_fallthru
      _
    // Predicated region
    $region22: #{tpu_custom_call.1} parent=1 // pred_check
      _
    $region23: #{tpu_custom_call.1} parent=1 // pred_check_branch
      %57 = sbr.rel (0) target = $region25
    $region24: #{tpu_custom_call.1} parent=1 // pred_region
      %58 = dma.done [#allocation7], 8192
    $region25: #{tpu_custom_call.1} parent=1 // pred_fallthru
      _
    // Predicated region
    $region26: #{tpu_custom_call.1} parent=1 // pred_check
      _
    $region27: #{tpu_custom_call.1} parent=1 // pred_check_branch
      %60 = sbr.rel (0) target = $region29
    $region28: #{tpu_custom_call.1} parent=1 // pred_region
      %61 = dma.done [#allocation7], 256
    $region29: #{tpu_custom_call.1} parent=1 // pred_fallthru
      _
    %p63 = scmp.eq.s32.totalorder 0, 0
    // Predicated region
    $region30: #{tpu_custom_call.1} parent=1 // pred_check
      %p64 = pneg %p63
    $region31: #{tpu_custom_call.1} parent=1 // pred_check_branch
      %66 = sbr.rel (%p64) target = $region33
    $region32: #{tpu_custom_call.1} parent=1 // pred_region
      %67 = vst [vmem:[#allocation2] sm:$0xff] 0.0
      %68 = vst [vmem:[#allocation2 + $0x8] sm:$0xff] 0.0
    $region33: #{tpu_custom_call.1} parent=1 // pred_fallthru
      _
    %v69 = vld [vmem:[#allocation2] sm:$0xff]
    %v70 = vld [vmem:[#allocation2 + $0x8] sm:$0xff]
    %v71 = vld [vmem:[#allocation3] sm:$0xff]
    %v72 = vld [vmem:[#allocation3 + $0x8] sm:$0xff]
    %v73 = vld [vmem:[#allocation3 + $0x10] sm:$0xff]
    %v74 = vld [vmem:[#allocation3 + $0x18] sm:$0xff]
    %v75 = vld [vmem:[#allocation3 + $0x20] sm:$0xff]
    %v76 = vld [vmem:[#allocation3 + $0x28] sm:$0xff]
    %v77 = vld [vmem:[#allocation3 + $0x30] sm:$0xff]
    %v78 = vld [vmem:[#allocation3 + $0x38] sm:$0xff]
    %v79 = vld [vmem:[#allocation6] sm:$0xf]
    %v80 = vld [vmem:[#allocation6 + $0x4] sm:$0xf]
    %v81 = vld [vmem:[#allocation6 + $0x8] sm:$0xf]
    %v82 = vld [vmem:[#allocation6 + $0xc] sm:$0xf]
    %v83 = vld [vmem:[#allocation6 + $0x10] sm:$0xf]
    %v84 = vld [vmem:[#allocation6 + $0x14] sm:$0xf]
    %v85 = vld [vmem:[#allocation6 + $0x18] sm:$0xf]
    %v86 = vld [vmem:[#allocation6 + $0x1c] sm:$0xf]
    %v87 = vld [vmem:[#allocation6 + $0x20] sm:$0xf]
    %v88 = vld [vmem:[#allocation6 + $0x24] sm:$0xf]
    %v89 = vld [vmem:[#allocation6 + $0x28] sm:$0xf]
    %v90 = vld [vmem:[#allocation6 + $0x2c] sm:$0xf]
    %v91 = vld [vmem:[#allocation6 + $0x30] sm:$0xf]
    %v92 = vld [vmem:[#allocation6 + $0x34] sm:$0xf]
    %v93 = vld [vmem:[#allocation6 + $0x38] sm:$0xf]
    %v94 = vld [vmem:[#allocation6 + $0x3c] sm:$0xf]
    %v95 = vld [vmem:[#allocation6 + $0x40] sm:$0xf]
    %v96 = vld [vmem:[#allocation6 + $0x44] sm:$0xf]
    %v97 = vld [vmem:[#allocation6 + $0x48] sm:$0xf]
    %v98 = vld [vmem:[#allocation6 + $0x4c] sm:$0xf]
    %v99 = vld [vmem:[#allocation6 + $0x50] sm:$0xf]
    %v100 = vld [vmem:[#allocation6 + $0x54] sm:$0xf]
    %v101 = vld [vmem:[#allocation6 + $0x58] sm:$0xf]
    %v102 = vld [vmem:[#allocation6 + $0x5c] sm:$0xf]
    %v103 = vld [vmem:[#allocation6 + $0x60] sm:$0xf]
    %v104 = vld [vmem:[#allocation6 + $0x64] sm:$0xf]
    %v105 = vld [vmem:[#allocation6 + $0x68] sm:$0xf]
    %v106 = vld [vmem:[#allocation6 + $0x6c] sm:$0xf]
    %v107 = vld [vmem:[#allocation6 + $0x70] sm:$0xf]
    %v108 = vld [vmem:[#allocation6 + $0x74] sm:$0xf]
    %v109 = vld [vmem:[#allocation6 + $0x78] sm:$0xf]
    %v110 = vld [vmem:[#allocation6 + $0x7c] sm:$0xf]
    %v111 = vld [vmem:[#allocation6 + $0x80] sm:$0xf]
    %v112 = vld [vmem:[#allocation6 + $0x84] sm:$0xf]
    %v113 = vld [vmem:[#allocation6 + $0x88] sm:$0xf]
    %v114 = vld [vmem:[#allocation6 + $0x8c] sm:$0xf]
    %v115 = vld [vmem:[#allocation6 + $0x90] sm:$0xf]
    %v116 = vld [vmem:[#allocation6 + $0x94] sm:$0xf]
    %v117 = vld [vmem:[#allocation6 + $0x98] sm:$0xf]
    %v118 = vld [vmem:[#allocation6 + $0x9c] sm:$0xf]
    %v119 = vld [vmem:[#allocation6 + $0xa0] sm:$0xf]
    %v120 = vld [vmem:[#allocation6 + $0xa4] sm:$0xf]
    %v121 = vld [vmem:[#allocation6 + $0xa8] sm:$0xf]
    %v122 = vld [vmem:[#allocation6 + $0xac] sm:$0xf]
    %v123 = vld [vmem:[#allocation6 + $0xb0] sm:$0xf]
    %v124 = vld [vmem:[#allocation6 + $0xb4] sm:$0xf]
    %v125 = vld [vmem:[#allocation6 + $0xb8] sm:$0xf]
    %v126 = vld [vmem:[#allocation6 + $0xbc] sm:$0xf]
    %v127 = vld [vmem:[#allocation6 + $0xc0] sm:$0xf]
    %v128 = vld [vmem:[#allocation6 + $0xc4] sm:$0xf]
    %v129 = vld [vmem:[#allocation6 + $0xc8] sm:$0xf]
    %v130 = vld [vmem:[#allocation6 + $0xcc] sm:$0xf]
    %v131 = vld [vmem:[#allocation6 + $0xd0] sm:$0xf]
    %v132 = vld [vmem:[#allocation6 + $0xd4] sm:$0xf]
    %v133 = vld [vmem:[#allocation6 + $0xd8] sm:$0xf]
    %v134 = vld [vmem:[#allocation6 + $0xdc] sm:$0xf]
    %v135 = vld [vmem:[#allocation6 + $0xe0] sm:$0xf]
    %v136 = vld [vmem:[#allocation6 + $0xe4] sm:$0xf]
    %v137 = vld [vmem:[#allocation6 + $0xe8] sm:$0xf]
    %v138 = vld [vmem:[#allocation6 + $0xec] sm:$0xf]
    %v139 = vld [vmem:[#allocation6 + $0xf0] sm:$0xf]
    %v140 = vld [vmem:[#allocation6 + $0xf4] sm:$0xf]
    %v141 = vld [vmem:[#allocation6 + $0xf8] sm:$0xf]
    %v142 = vld [vmem:[#allocation6 + $0xfc] sm:$0xf]
    %v143 = vld [vmem:[#allocation6 + $0x100] sm:$0xf]
    %v144 = vld [vmem:[#allocation6 + $0x104] sm:$0xf]
    %v145 = vld [vmem:[#allocation6 + $0x108] sm:$0xf]
    %v146 = vld [vmem:[#allocation6 + $0x10c] sm:$0xf]
    %v147 = vld [vmem:[#allocation6 + $0x110] sm:$0xf]
    %v148 = vld [vmem:[#allocation6 + $0x114] sm:$0xf]
    %v149 = vld [vmem:[#allocation6 + $0x118] sm:$0xf]
    %v150 = vld [vmem:[#allocation6 + $0x11c] sm:$0xf]
    %v151 = vld [vmem:[#allocation6 + $0x120] sm:$0xf]
    %v152 = vld [vmem:[#allocation6 + $0x124] sm:$0xf]
    %v153 = vld [vmem:[#allocation6 + $0x128] sm:$0xf]
    %v154 = vld [vmem:[#allocation6 + $0x12c] sm:$0xf]
    %v155 = vld [vmem:[#allocation6 + $0x130] sm:$0xf]
    %v156 = vld [vmem:[#allocation6 + $0x134] sm:$0xf]
    %v157 = vld [vmem:[#allocation6 + $0x138] sm:$0xf]
    %v158 = vld [vmem:[#allocation6 + $0x13c] sm:$0xf]
    %v159 = vld [vmem:[#allocation6 + $0x140] sm:$0xf]
    %v160 = vld [vmem:[#allocation6 + $0x144] sm:$0xf]
    %v161 = vld [vmem:[#allocation6 + $0x148] sm:$0xf]
    %v162 = vld [vmem:[#allocation6 + $0x14c] sm:$0xf]
    %v163 = vld [vmem:[#allocation6 + $0x150] sm:$0xf]
    %v164 = vld [vmem:[#allocation6 + $0x154] sm:$0xf]
    %v165 = vld [vmem:[#allocation6 + $0x158] sm:$0xf]
    %v166 = vld [vmem:[#allocation6 + $0x15c] sm:$0xf]
    %v167 = vld [vmem:[#allocation6 + $0x160] sm:$0xf]
    %v168 = vld [vmem:[#allocation6 + $0x164] sm:$0xf]
    %v169 = vld [vmem:[#allocation6 + $0x168] sm:$0xf]
    %v170 = vld [vmem:[#allocation6 + $0x16c] sm:$0xf]
    %v171 = vld [vmem:[#allocation6 + $0x170] sm:$0xf]
    %v172 = vld [vmem:[#allocation6 + $0x174] sm:$0xf]
    %v173 = vld [vmem:[#allocation6 + $0x178] sm:$0xf]
    %v174 = vld [vmem:[#allocation6 + $0x17c] sm:$0xf]
    %v175 = vld [vmem:[#allocation6 + $0x180] sm:$0xf]
    %v176 = vld [vmem:[#allocation6 + $0x184] sm:$0xf]
    %v177 = vld [vmem:[#allocation6 + $0x188] sm:$0xf]
    %v178 = vld [vmem:[#allocation6 + $0x18c] sm:$0xf]
    %v179 = vld [vmem:[#allocation6 + $0x190] sm:$0xf]
    %v180 = vld [vmem:[#allocation6 + $0x194] sm:$0xf]
    %v181 = vld [vmem:[#allocation6 + $0x198] sm:$0xf]
    %v182 = vld [vmem:[#allocation6 + $0x19c] sm:$0xf]
    %v183 = vld [vmem:[#allocation6 + $0x1a0] sm:$0xf]
    %v184 = vld [vmem:[#allocation6 + $0x1a4] sm:$0xf]
    %v185 = vld [vmem:[#allocation6 + $0x1a8] sm:$0xf]
    %v186 = vld [vmem:[#allocation6 + $0x1ac] sm:$0xf]
    %v187 = vld [vmem:[#allocation6 + $0x1b0] sm:$0xf]
    %v188 = vld [vmem:[#allocation6 + $0x1b4] sm:$0xf]
    %v189 = vld [vmem:[#allocation6 + $0x1b8] sm:$0xf]
    %v190 = vld [vmem:[#allocation6 + $0x1bc] sm:$0xf]
    %v191 = vld [vmem:[#allocation6 + $0x1c0] sm:$0xf]
    %v192 = vld [vmem:[#allocation6 + $0x1c4] sm:$0xf]
    %v193 = vld [vmem:[#allocation6 + $0x1c8] sm:$0xf]
    %v194 = vld [vmem:[#allocation6 + $0x1cc] sm:$0xf]
    %v195 = vld [vmem:[#allocation6 + $0x1d0] sm:$0xf]
    %v196 = vld [vmem:[#allocation6 + $0x1d4] sm:$0xf]
    %v197 = vld [vmem:[#allocation6 + $0x1d8] sm:$0xf]
    %v198 = vld [vmem:[#allocation6 + $0x1dc] sm:$0xf]
    %v199 = vld [vmem:[#allocation6 + $0x1e0] sm:$0xf]
    %v200 = vld [vmem:[#allocation6 + $0x1e4] sm:$0xf]
    %v201 = vld [vmem:[#allocation6 + $0x1e8] sm:$0xf]
    %v202 = vld [vmem:[#allocation6 + $0x1ec] sm:$0xf]
    %v203 = vld [vmem:[#allocation6 + $0x1f0] sm:$0xf]
    %v204 = vld [vmem:[#allocation6 + $0x1f4] sm:$0xf]
    %v205 = vld [vmem:[#allocation6 + $0x1f8] sm:$0xf]
    %v206 = vld [vmem:[#allocation6 + $0x1fc] sm:$0xf]
    %v215 = vunpack.c.l.b16 %v71
    %v216 = vunpack.c.h.b16 %v71
    %v217 = vunpack.c.l.b16 %v72
    %v218 = vunpack.c.h.b16 %v72
    %v219 = vunpack.c.l.b16 %v73
    %v220 = vunpack.c.h.b16 %v73
    %v221 = vunpack.c.l.b16 %v74
    %v222 = vunpack.c.h.b16 %v74
    %v223 = vunpack.c.l.b16 %v75
    %v224 = vunpack.c.h.b16 %v75
    %v225 = vunpack.c.l.b16 %v76
    %v226 = vunpack.c.h.b16 %v76
    %v227 = vunpack.c.l.b16 %v77
    %v228 = vunpack.c.h.b16 %v77
    %v229 = vunpack.c.l.b16 %v78
    %v230 = vunpack.c.h.b16 %v78
    %v231 = vpack.c.b16 %v223, %v215
    %v232 = vpack.c.b16 %v224, %v216
    %v233 = vpack.c.b16 %v225, %v217
    %v234 = vpack.c.b16 %v226, %v218
    %v235 = vpack.c.b16 %v227, %v219
    %v236 = vpack.c.b16 %v228, %v220
    %v237 = vpack.c.b16 %v229, %v221
    %v238 = vpack.c.b16 %v230, %v222
    %v375 = vunpack.c.l.b16 %v79
    %v376 = vunpack.c.l.b16 %v80
    %v377 = vunpack.c.l.b16 %v81
    %v378 = vunpack.c.l.b16 %v82
    %v379 = vunpack.c.l.b16 %v83
    %v380 = vunpack.c.l.b16 %v84
    %v381 = vunpack.c.l.b16 %v85
    %v382 = vunpack.c.l.b16 %v86
    %v383 = vunpack.c.l.b16 %v87
    %v384 = vunpack.c.l.b16 %v88
    %v385 = vunpack.c.l.b16 %v89
    %v386 = vunpack.c.l.b16 %v90
    %v387 = vunpack.c.l.b16 %v91
    %v388 = vunpack.c.l.b16 %v92
    %v389 = vunpack.c.l.b16 %v93
    %v390 = vunpack.c.l.b16 %v94
    %v391 = vunpack.c.l.b16 %v95
    %v392 = vunpack.c.l.b16 %v96
    %v393 = vunpack.c.l.b16 %v97
    %v394 = vunpack.c.l.b16 %v98
    %v395 = vunpack.c.l.b16 %v99
    %v396 = vunpack.c.l.b16 %v100
    %v397 = vunpack.c.l.b16 %v101
    %v398 = vunpack.c.l.b16 %v102
    %v399 = vunpack.c.l.b16 %v103
    %v400 = vunpack.c.l.b16 %v104
    %v401 = vunpack.c.l.b16 %v105
    %v402 = vunpack.c.l.b16 %v106
    %v403 = vunpack.c.l.b16 %v107
    %v404 = vunpack.c.l.b16 %v108
    %v405 = vunpack.c.l.b16 %v109
    %v406 = vunpack.c.l.b16 %v110
    %v407 = vunpack.c.l.b16 %v111
    %v408 = vunpack.c.l.b16 %v112
    %v409 = vunpack.c.l.b16 %v113
    %v410 = vunpack.c.l.b16 %v114
    %v411 = vunpack.c.l.b16 %v115
    %v412 = vunpack.c.l.b16 %v116
    %v413 = vunpack.c.l.b16 %v117
    %v414 = vunpack.c.l.b16 %v118
    %v415 = vunpack.c.l.b16 %v119
    %v416 = vunpack.c.l.b16 %v120
    %v417 = vunpack.c.l.b16 %v121
    %v418 = vunpack.c.l.b16 %v122
    %v419 = vunpack.c.l.b16 %v123
    %v420 = vunpack.c.l.b16 %v124
    %v421 = vunpack.c.l.b16 %v125
    %v422 = vunpack.c.l.b16 %v126
    %v423 = vunpack.c.l.b16 %v127
    %v424 = vunpack.c.l.b16 %v128
    %v425 = vunpack.c.l.b16 %v129
    %v426 = vunpack.c.l.b16 %v130
    %v427 = vunpack.c.l.b16 %v131
    %v428 = vunpack.c.l.b16 %v132
    %v429 = vunpack.c.l.b16 %v133
    %v430 = vunpack.c.l.b16 %v134
    %v431 = vunpack.c.l.b16 %v135
    %v432 = vunpack.c.l.b16 %v136
    %v433 = vunpack.c.l.b16 %v137
    %v434 = vunpack.c.l.b16 %v138
    %v435 = vunpack.c.l.b16 %v139
    %v436 = vunpack.c.l.b16 %v140
    %v437 = vunpack.c.l.b16 %v141
    %v438 = vunpack.c.l.b16 %v142
    %v439 = vunpack.c.l.b16 %v143
    %v440 = vunpack.c.l.b16 %v144
    %v441 = vunpack.c.l.b16 %v145
    %v442 = vunpack.c.l.b16 %v146
    %v443 = vunpack.c.l.b16 %v147
    %v444 = vunpack.c.l.b16 %v148
    %v445 = vunpack.c.l.b16 %v149
    %v446 = vunpack.c.l.b16 %v150
    %v447 = vunpack.c.l.b16 %v151
    %v448 = vunpack.c.l.b16 %v152
    %v449 = vunpack.c.l.b16 %v153
    %v450 = vunpack.c.l.b16 %v154
    %v451 = vunpack.c.l.b16 %v155
    %v452 = vunpack.c.l.b16 %v156
    %v453 = vunpack.c.l.b16 %v157
    %v454 = vunpack.c.l.b16 %v158
    %v455 = vunpack.c.l.b16 %v159
    %v456 = vunpack.c.l.b16 %v160
    %v457 = vunpack.c.l.b16 %v161
    %v458 = vunpack.c.l.b16 %v162
    %v459 = vunpack.c.l.b16 %v163
    %v460 = vunpack.c.l.b16 %v164
    %v461 = vunpack.c.l.b16 %v165
    %v462 = vunpack.c.l.b16 %v166
    %v463 = vunpack.c.l.b16 %v167
    %v464 = vunpack.c.l.b16 %v168
    %v465 = vunpack.c.l.b16 %v169
    %v466 = vunpack.c.l.b16 %v170
    %v467 = vunpack.c.l.b16 %v171
    %v468 = vunpack.c.l.b16 %v172
    %v469 = vunpack.c.l.b16 %v173
    %v470 = vunpack.c.l.b16 %v174
    %v471 = vunpack.c.l.b16 %v175
    %v472 = vunpack.c.l.b16 %v176
    %v473 = vunpack.c.l.b16 %v177
    %v474 = vunpack.c.l.b16 %v178
    %v475 = vunpack.c.l.b16 %v179
    %v476 = vunpack.c.l.b16 %v180
    %v477 = vunpack.c.l.b16 %v181
    %v478 = vunpack.c.l.b16 %v182
    %v479 = vunpack.c.l.b16 %v183
    %v480 = vunpack.c.l.b16 %v184
    %v481 = vunpack.c.l.b16 %v185
    %v482 = vunpack.c.l.b16 %v186
    %v483 = vunpack.c.l.b16 %v187
    %v484 = vunpack.c.l.b16 %v188
    %v485 = vunpack.c.l.b16 %v189
    %v486 = vunpack.c.l.b16 %v190
    %v487 = vunpack.c.l.b16 %v191
    %v488 = vunpack.c.l.b16 %v192
    %v489 = vunpack.c.l.b16 %v193
    %v490 = vunpack.c.l.b16 %v194
    %v491 = vunpack.c.l.b16 %v195
    %v492 = vunpack.c.l.b16 %v196
    %v493 = vunpack.c.l.b16 %v197
    %v494 = vunpack.c.l.b16 %v198
    %v495 = vunpack.c.l.b16 %v199
    %v496 = vunpack.c.l.b16 %v200
    %v497 = vunpack.c.l.b16 %v201
    %v498 = vunpack.c.l.b16 %v202
    %v499 = vunpack.c.l.b16 %v203
    %v500 = vunpack.c.l.b16 %v204
    %v501 = vunpack.c.l.b16 %v205
    %v502 = vunpack.c.l.b16 %v206
    %v503 = vpack.c.b16 %v376, %v375
    %v504 = vpack.c.b16 %v378, %v377
    %v505 = vpack.c.b16 %v380, %v379
    %v506 = vpack.c.b16 %v382, %v381
    %v507 = vpack.c.b16 %v384, %v383
    %v508 = vpack.c.b16 %v386, %v385
    %v509 = vpack.c.b16 %v388, %v387
    %v510 = vpack.c.b16 %v390, %v389
    %v511 = vpack.c.b16 %v392, %v391
    %v512 = vpack.c.b16 %v394, %v393
    %v513 = vpack.c.b16 %v396, %v395
    %v514 = vpack.c.b16 %v398, %v397
    %v515 = vpack.c.b16 %v400, %v399
    %v516 = vpack.c.b16 %v402, %v401
    %v517 = vpack.c.b16 %v404, %v403
    %v518 = vpack.c.b16 %v406, %v405
    %v519 = vpack.c.b16 %v408, %v407
    %v520 = vpack.c.b16 %v410, %v409
    %v521 = vpack.c.b16 %v412, %v411
    %v522 = vpack.c.b16 %v414, %v413
    %v523 = vpack.c.b16 %v416, %v415
    %v524 = vpack.c.b16 %v418, %v417
    %v525 = vpack.c.b16 %v420, %v419
    %v526 = vpack.c.b16 %v422, %v421
    %v527 = vpack.c.b16 %v424, %v423
    %v528 = vpack.c.b16 %v426, %v425
    %v529 = vpack.c.b16 %v428, %v427
    %v530 = vpack.c.b16 %v430, %v429
    %v531 = vpack.c.b16 %v432, %v431
    %v532 = vpack.c.b16 %v434, %v433
    %v533 = vpack.c.b16 %v436, %v435
    %v534 = vpack.c.b16 %v438, %v437
    %v535 = vpack.c.b16 %v440, %v439
    %v536 = vpack.c.b16 %v442, %v441
    %v537 = vpack.c.b16 %v444, %v443
    %v538 = vpack.c.b16 %v446, %v445
    %v539 = vpack.c.b16 %v448, %v447
    %v540 = vpack.c.b16 %v450, %v449
    %v541 = vpack.c.b16 %v452, %v451
    %v542 = vpack.c.b16 %v454, %v453
    %v543 = vpack.c.b16 %v456, %v455
    %v544 = vpack.c.b16 %v458, %v457
    %v545 = vpack.c.b16 %v460, %v459
    %v546 = vpack.c.b16 %v462, %v461
    %v547 = vpack.c.b16 %v464, %v463
    %v548 = vpack.c.b16 %v466, %v465
    %v549 = vpack.c.b16 %v468, %v467
    %v550 = vpack.c.b16 %v470, %v469
    %v551 = vpack.c.b16 %v472, %v471
    %v552 = vpack.c.b16 %v474, %v473
    %v553 = vpack.c.b16 %v476, %v475
    %v554 = vpack.c.b16 %v478, %v477
    %v555 = vpack.c.b16 %v480, %v479
    %v556 = vpack.c.b16 %v482, %v481
    %v557 = vpack.c.b16 %v484, %v483
    %v558 = vpack.c.b16 %v486, %v485
    %v559 = vpack.c.b16 %v488, %v487
    %v560 = vpack.c.b16 %v490, %v489
    %v561 = vpack.c.b16 %v492, %v491
    %v562 = vpack.c.b16 %v494, %v493
    %v563 = vpack.c.b16 %v496, %v495
    %v564 = vpack.c.b16 %v498, %v497
    %v565 = vpack.c.b16 %v500, %v499
    %v566 = vpack.c.b16 %v502, %v501
    %631 = vmatprep.subr.bf16.mxu0 0
    %632 = vmatpush1.bf16.msra.mxu0 %v503
    %633 = vmatprep.subr.bf16.mxu0 0
    %634 = vmatpush1.bf16.msra.mxu0 %v504
    %635 = vmatprep.subr.bf16.mxu0 0
    %636 = vmatpush1.bf16.msra.mxu0 %v505
    %637 = vmatprep.subr.bf16.mxu0 0
    %638 = vmatpush1.bf16.msra.mxu0 %v506
    %639 = vmatprep.subr.bf16.mxu0 0
    %640 = vmatpush1.bf16.msra.mxu0 %v507
    %641 = vmatprep.subr.bf16.mxu0 0
    %642 = vmatpush1.bf16.msra.mxu0 %v508
    %643 = vmatprep.subr.bf16.mxu0 0
    %644 = vmatpush1.bf16.msra.mxu0 %v509
    %645 = vmatprep.subr.bf16.mxu0 0
    %646 = vmatpush1.bf16.msra.mxu0 %v510
    %647 = vmatprep.subr.bf16.mxu0 0
    %648 = vmatpush1.bf16.msra.mxu0 %v511
    %649 = vmatprep.subr.bf16.mxu0 0
    %650 = vmatpush1.bf16.msra.mxu0 %v512
    %651 = vmatprep.subr.bf16.mxu0 0
    %652 = vmatpush1.bf16.msra.mxu0 %v513
    %653 = vmatprep.subr.bf16.mxu0 0
    %654 = vmatpush1.bf16.msra.mxu0 %v514
    %655 = vmatprep.subr.bf16.mxu0 0
    %656 = vmatpush1.bf16.msra.mxu0 %v515
    %657 = vmatprep.subr.bf16.mxu0 0
    %658 = vmatpush1.bf16.msra.mxu0 %v516
    %659 = vmatprep.subr.bf16.mxu0 0
    %660 = vmatpush1.bf16.msra.mxu0 %v517
    %661 = vmatprep.subr.bf16.mxu0 0
    %662 = vmatpush1.bf16.msra.mxu0 %v518
    %663 = vmatprep.mubr.bf16.mxu0 %v232
    %664 = vmatmul.mubr.bf16.gmra.mrb[0].mxu0 %v231
    %v665 = vpop.f32.mrb[0].mxu0
    %v666 = vadd.f32 0.0, %v665
    %v667 = vpop.f32.mrb[0].mxu0
    %v668 = vpop.f32.mrb[0].mxu0
    %v669 = vadd.f32 0.0, %v668
    %v670 = vpop.f32.mrb[0].mxu0
    %671 = vdwg.mxu0
    %672 = vmatprep.subr.bf16.mxu0 0
    %673 = vmatpush1.bf16.msra.mxu0 %v519
    %674 = vmatprep.subr.bf16.mxu0 0
    %675 = vmatpush1.bf16.msra.mxu0 %v520
    %676 = vmatprep.subr.bf16.mxu0 0
    %677 = vmatpush1.bf16.msra.mxu0 %v521
    %678 = vmatprep.subr.bf16.mxu0 0
    %679 = vmatpush1.bf16.msra.mxu0 %v522
    %680 = vmatprep.subr.bf16.mxu0 0
    %681 = vmatpush1.bf16.msra.mxu0 %v523
    %682 = vmatprep.subr.bf16.mxu0 0
    %683 = vmatpush1.bf16.msra.mxu0 %v524
    %684 = vmatprep.subr.bf16.mxu0 0
    %685 = vmatpush1.bf16.msra.mxu0 %v525
    %686 = vmatprep.subr.bf16.mxu0 0
    %687 = vmatpush1.bf16.msra.mxu0 %v526
    %688 = vmatprep.subr.bf16.mxu0 0
    %689 = vmatpush1.bf16.msra.mxu0 %v527
    %690 = vmatprep.subr.bf16.mxu0 0
    %691 = vmatpush1.bf16.msra.mxu0 %v528
    %692 = vmatprep.subr.bf16.mxu0 0
    %693 = vmatpush1.bf16.msra.mxu0 %v529
    %694 = vmatprep.subr.bf16.mxu0 0
    %695 = vmatpush1.bf16.msra.mxu0 %v530
    %696 = vmatprep.subr.bf16.mxu0 0
    %697 = vmatpush1.bf16.msra.mxu0 %v531
    %698 = vmatprep.subr.bf16.mxu0 0
    %699 = vmatpush1.bf16.msra.mxu0 %v532
    %700 = vmatprep.subr.bf16.mxu0 0
    %701 = vmatpush1.bf16.msra.mxu0 %v533
    %702 = vmatprep.subr.bf16.mxu0 0
    %703 = vmatpush1.bf16.msra.mxu0 %v534
    %704 = vmatprep.mubr.bf16.mxu0 %v234
    %705 = vmatmul.mubr.bf16.gmra.mrb[0].mxu0 %v233
    %v706 = vpop.f32.mrb[0].mxu0
    %v707 = vadd.f32 %v666, %v706
    %v708 = vpop.f32.mrb[0].mxu0
    %v709 = vpop.f32.mrb[0].mxu0
    %v710 = vadd.f32 %v669, %v709
    %v711 = vpop.f32.mrb[0].mxu0
    %712 = vdwg.mxu0
    %713 = vmatprep.subr.bf16.mxu0 0
    %714 = vmatpush1.bf16.msra.mxu0 %v535
    %715 = vmatprep.subr.bf16.mxu0 0
    %716 = vmatpush1.bf16.msra.mxu0 %v536
    %717 = vmatprep.subr.bf16.mxu0 0
    %718 = vmatpush1.bf16.msra.mxu0 %v537
    %719 = vmatprep.subr.bf16.mxu0 0
    %720 = vmatpush1.bf16.msra.mxu0 %v538
    %721 = vmatprep.subr.bf16.mxu0 0
    %722 = vmatpush1.bf16.msra.mxu0 %v539
    %723 = vmatprep.subr.bf16.mxu0 0
    %724 = vmatpush1.bf16.msra.mxu0 %v540
    %725 = vmatprep.subr.bf16.mxu0 0
    %726 = vmatpush1.bf16.msra.mxu0 %v541
    %727 = vmatprep.subr.bf16.mxu0 0
    %728 = vmatpush1.bf16.msra.mxu0 %v542
    %729 = vmatprep.subr.bf16.mxu0 0
    %730 = vmatpush1.bf16.msra.mxu0 %v543
    %731 = vmatprep.subr.bf16.mxu0 0
    %732 = vmatpush1.bf16.msra.mxu0 %v544
    %733 = vmatprep.subr.bf16.mxu0 0
    %734 = vmatpush1.bf16.msra.mxu0 %v545
    %735 = vmatprep.subr.bf16.mxu0 0
    %736 = vmatpush1.bf16.msra.mxu0 %v546
    %737 = vmatprep.subr.bf16.mxu0 0
    %738 = vmatpush1.bf16.msra.mxu0 %v547
    %739 = vmatprep.subr.bf16.mxu0 0
    %740 = vmatpush1.bf16.msra.mxu0 %v548
    %741 = vmatprep.subr.bf16.mxu0 0
    %742 = vmatpush1.bf16.msra.mxu0 %v549
    %743 = vmatprep.subr.bf16.mxu0 0
    %744 = vmatpush1.bf16.msra.mxu0 %v550
    %745 = vmatprep.mubr.bf16.mxu0 %v236
    %746 = vmatmul.mubr.bf16.gmra.mrb[0].mxu0 %v235
    %v747 = vpop.f32.mrb[0].mxu0
    %v748 = vadd.f32 %v707, %v747
    %v749 = vpop.f32.mrb[0].mxu0
    %v750 = vpop.f32.mrb[0].mxu0
    %v751 = vadd.f32 %v710, %v750
    %v752 = vpop.f32.mrb[0].mxu0
    %753 = vdwg.mxu0
    %754 = vmatprep.subr.bf16.mxu0 0
    %755 = vmatpush1.bf16.msra.mxu0 %v551
    %756 = vmatprep.subr.bf16.mxu0 0
    %757 = vmatpush1.bf16.msra.mxu0 %v552
    %758 = vmatprep.subr.bf16.mxu0 0
    %759 = vmatpush1.bf16.msra.mxu0 %v553
    %760 = vmatprep.subr.bf16.mxu0 0
    %761 = vmatpush1.bf16.msra.mxu0 %v554
    %762 = vmatprep.subr.bf16.mxu0 0
    %763 = vmatpush1.bf16.msra.mxu0 %v555
    %764 = vmatprep.subr.bf16.mxu0 0
    %765 = vmatpush1.bf16.msra.mxu0 %v556
    %766 = vmatprep.subr.bf16.mxu0 0
    %767 = vmatpush1.bf16.msra.mxu0 %v557
    %768 = vmatprep.subr.bf16.mxu0 0
    %769 = vmatpush1.bf16.msra.mxu0 %v558
    %770 = vmatprep.subr.bf16.mxu0 0
    %771 = vmatpush1.bf16.msra.mxu0 %v559
    %772 = vmatprep.subr.bf16.mxu0 0
    %773 = vmatpush1.bf16.msra.mxu0 %v560
    %774 = vmatprep.subr.bf16.mxu0 0
    %775 = vmatpush1.bf16.msra.mxu0 %v561
    %776 = vmatprep.subr.bf16.mxu0 0
    %777 = vmatpush1.bf16.msra.mxu0 %v562
    %778 = vmatprep.subr.bf16.mxu0 0
    %779 = vmatpush1.bf16.msra.mxu0 %v563
    %780 = vmatprep.subr.bf16.mxu0 0
    %781 = vmatpush1.bf16.msra.mxu0 %v564
    %782 = vmatprep.subr.bf16.mxu0 0
    %783 = vmatpush1.bf16.msra.mxu0 %v565
    %784 = vmatprep.subr.bf16.mxu0 0
    %785 = vmatpush1.bf16.msra.mxu0 %v566
    %786 = vmatprep.mubr.bf16.mxu0 %v238
    %787 = vmatmul.mubr.bf16.gmra.mrb[0].mxu0 %v237
    %v788 = vpop.f32.mrb[0].mxu0
    %v789 = vadd.f32 %v748, %v788
    %v790 = vpop.f32.mrb[0].mxu0
    %v791 = vpop.f32.mrb[0].mxu0
    %v792 = vadd.f32 %v751, %v791
    %v793 = vpop.f32.mrb[0].mxu0
    %794 = vdwg.mxu0
    %v795 = vadd.f32 %v69, %v789
    %v796 = vadd.f32 %v70, %v792
    %797 = vst [vmem:[#allocation2] sm:$0xff] %v795
    %798 = vst [vmem:[#allocation2 + $0x8] sm:$0xff] %v796
    // Predicated region
    $region34: #{tpu_custom_call.1} parent=1 // pred_check
      %p799 = pneg %p63
    $region35: #{tpu_custom_call.1} parent=1 // pred_check_branch
      %801 = sbr.rel (%p799) target = $region37
    $region36: #{tpu_custom_call.1} parent=1 // pred_region
      %v802 = vld [vmem:[%s2] sm:$0x1]
      %v803 = vld [vmem:[#allocation2] sm:$0xff]
      %v804 = vld [vmem:[#allocation2 + $0x8] sm:$0xff]
      %v806 = vlaneseq
      %v807 = vshrl.u32 %v806, 7
      %v808 = vsub.s32 0, %v807
      %v809 = vrot.slane %v802, %v808
      %v811 = vadd.f32 %v803, %v809
      %v812 = vadd.f32 %v804, %v809
      %v813 = vld [vmem:[#allocation8] sm:$0xff]
      %v814 = vld [vmem:[#allocation8 + $0x8] sm:$0xff]
      %v815 = vadd.f32 %v811, %v813
      %v816 = vadd.f32 %v812, %v814
      %v817 = vlaneseq
      %v818 = vand.u32 %v817, 127
      %vm819 = vcmp.lt.s32.totalorder %v818, 16
      %v820 = vsel %vm819, %v811, -1e+30
      %v821 = vsel %vm819, %v812, -1e+30
      %822 = vmax.xlane.f32.xlu0 %v820
      %v823 = vpop.xlane.xlu0 %822
      %824 = vmax.xlane.f32.xlu0 %v821
      %v825 = vpop.xlane.xlu0 %824
      %v826 = vsub.f32 %v820, %v823
      %v827 = vsub.f32 %v821, %v825
      %v828 = vmul.f32 %v826, 1.442695
      %v829 = vpow.pop %v828
      %v830 = vmul.f32 %v827, 1.442695
      %v831 = vpow.pop %v830
      %832 = vadd.xlane.f32.xlu0 %v829
      %v833 = vpop.xlane.xlu0 %832
      %834 = vadd.xlane.f32.xlu0 %v831
      %v835 = vpop.xlane.xlu0 %834
      %v836 = vrcp.pop %v833
      %v837 = vmul.f32 1.0, %v836
      %v838 = vrcp.pop %v835
      %v839 = vmul.f32 1.0, %v838
      %v840 = vlog2.pop %v833
      %v841 = vmul.f32 %v840, 0.6931472
      %v842 = vlog2.pop %v835
      %v843 = vmul.f32 %v842, 0.6931472
      %v844 = vmul.f32 %v829, %v826
      %v845 = vmul.f32 %v831, %v827
      %846 = vadd.xlane.f32.xlu0 %v844
      %v847 = vpop.xlane.xlu0 %846
      %848 = vadd.xlane.f32.xlu0 %v845
      %v849 = vpop.xlane.xlu0 %848
      %v850 = vmul.f32 %v847, %v837
      %v851 = vmul.f32 %v849, %v839
      %v852 = vsub.f32 %v841, %v850
      %v853 = vsub.f32 %v843, %v851
      %vm854 = vcmp.eq.f32.partialorder %v820, %v823
      %vm855 = vcmp.eq.f32.partialorder %v821, %v825
      %v856 = vsel %vm854, %v818, 128
      %v857 = vsel %vm855, %v818, 128
      %v858 = vand.u32 %v856, 65535
      %v859 = vshra.s32 %v856, 16
      %v860 = vcvt.s32.f32 %v858
      %v861 = vcvt.s32.f32 %v859
      %862 = vmin.xlane.f32.xlu0 %v861
      %v863 = vpop.xlane.xlu0 %862
      %vm864 = vcmp.eq.f32.partialorder %v861, %v863
      %v865 = vsel %vm864, %v860, inf
      %866 = vmin.xlane.f32.xlu0 %v865
      %v867 = vpop.xlane.xlu0 %866
      %v868 = vcvt.f32.s32 %v867
      %v869 = vcvt.f32.s32 %v863
      %v870 = vshll.u32 %v869, 16
      %v871 = vadd.s32 %v870, %v868
      %v872 = vand.u32 %v857, 65535
      %v873 = vshra.s32 %v857, 16
      %v874 = vcvt.s32.f32 %v872
      %v875 = vcvt.s32.f32 %v873
      %876 = vmin.xlane.f32.xlu0 %v875
      %v877 = vpop.xlane.xlu0 %876
      %vm878 = vcmp.eq.f32.partialorder %v875, %v877
      %v879 = vsel %vm878, %v874, inf
      %880 = vmin.xlane.f32.xlu0 %v879
      %v881 = vpop.xlane.xlu0 %880
      %v882 = vcvt.f32.s32 %v881
      %v883 = vcvt.f32.s32 %v877
      %v884 = vshll.u32 %v883, 16
      %v885 = vadd.s32 %v884, %v882
      %v886 = vsel %vm819, %v815, -1e+30
      %v887 = vsel %vm819, %v816, -1e+30
      %888 = vmax.xlane.f32.xlu0 %v886
      %v889 = vpop.xlane.xlu0 %888
      %890 = vmax.xlane.f32.xlu0 %v887
      %v891 = vpop.xlane.xlu0 %890
      %v892 = vsub.f32 %v886, %v889
      %v893 = vsub.f32 %v887, %v891
      %v894 = vmul.f32 %v892, 1.442695
      %v895 = vpow.pop %v894
      %v896 = vmul.f32 %v893, 1.442695
      %v897 = vpow.pop %v896
      %898 = vadd.xlane.f32.xlu0 %v895
      %v899 = vpop.xlane.xlu0 %898
      %900 = vadd.xlane.f32.xlu0 %v897
      %v901 = vpop.xlane.xlu0 %900
      %vm902 = vcmp.eq.s32.totalorder %v818, %v871
      %vm903 = vcmp.eq.s32.totalorder %v818, %v885
      %v904 = vsel %vm902, %v895, 0.0
      %v905 = vsel %vm903, %v897, 0.0
      %906 = vadd.xlane.f32.xlu0 %v904
      %v907 = vpop.xlane.xlu0 %906
      %908 = vadd.xlane.f32.xlu0 %v905
      %v909 = vpop.xlane.xlu0 %908
      %v910 = vrcp.pop %v899
      %v911 = vmul.f32 %v907, %v910
      %v912 = vrcp.pop %v901
      %v913 = vmul.f32 %v909, %v912
      %v914 = vsub.f32 %v837, %v911
      %v915 = vsub.f32 %v839, %v913
      %916 = vst [vmem:[#allocation9] sm:$0xff] %v811
      %917 = vst [vmem:[#allocation9 + $0x8] sm:$0xff] %v812
      %vm918 = vcmp.eq.s32.totalorder %v818, 0
      %vm919 = vcmp.eq.s32.totalorder %v818, 1
      %v920 = vsel %vm919, %v914, 0.0
      %v921 = vsel %vm919, %v915, 0.0
      %v922 = vsel %vm918, %v852, %v920
      %v923 = vsel %vm918, %v853, %v921
      %924 = vst [vmem:[#allocation10] sm:$0xff] %v922
      %925 = vst [vmem:[#allocation10 + $0x8] sm:$0xff] %v923
    $region37: #{tpu_custom_call.1} parent=1 // pred_fallthru
      _
    // Predicated region
    $region38: #{tpu_custom_call.1} parent=1 // pred_check
      _
    $region39: #{tpu_custom_call.1} parent=1 // pred_check_branch
      %927 = sbr.rel (0) target = $region41
    $region40: #{tpu_custom_call.1} parent=1 // pred_region
      %s929 = ssub.s32 256, 256
      %930 = vsyncadd [#allocation5], %s929
      %s931 = sshll.u32 [#allocation9], 4
      %s932 = int_to_ptr.vmem [resolvable:$true] %s931
      %937 = dma.vmem_to_hbm [thread:$0]  %s932, 256, %s4, [#allocation5], 128, 128, 8
    $region41: #{tpu_custom_call.1} parent=1 // pred_fallthru
      _
    // Predicated region
    $region42: #{tpu_custom_call.1} parent=1 // pred_check
      _
    $region43: #{tpu_custom_call.1} parent=1 // pred_check_branch
      %939 = sbr.rel (0) target = $region45
    $region44: #{tpu_custom_call.1} parent=1 // pred_region
      %s941 = ssub.s32 256, 256
      %942 = vsyncadd [#allocation11], %s941
      %s943 = sshll.u32 [#allocation10], 4
      %s944 = int_to_ptr.vmem [resolvable:$true] %s943
      %949 = dma.vmem_to_hbm [thread:$0]  %s944, 256, %s5, [#allocation11], 128, 128, 8
    $region45: #{tpu_custom_call.1} parent=1 // pred_fallthru
      _
    // Predicated region
    $region46: #{tpu_custom_call.1} parent=1 // pred_check
      _
    $region47: #{tpu_custom_call.1} parent=1 // pred_check_branch
      %951 = sbr.rel (0) target = $region49
    $region48: #{tpu_custom_call.1} parent=1 // pred_region
      %952 = dma.done [#allocation5], 256
    $region49: #{tpu_custom_call.1} parent=1 // pred_fallthru
      _
    // Predicated region
    $region50: #{tpu_custom_call.1} parent=1 // pred_check
      _
    $region51: #{tpu_custom_call.1} parent=1 // pred_check_branch
      %954 = sbr.rel (0) target = $region53
    $region52: #{tpu_custom_call.1} parent=1 // pred_region
      %955 = dma.done [#allocation11], 256
    $region53: #{tpu_custom_call.1} parent=1 // pred_fallthru
      _
    %956 = vsyncpa [#allocation4], 1
    %957 = vsyncpa [#allocation7], 1
    %958 = vsyncpa [#allocation5], 1
    %959 = vsyncpa [#allocation11], 1

</llo_original>
